<compile_context>
chip_gen: v6e
topology: v6e:2x2x1
jax: 0.10.0
libtpu: 0.0.40
codegen_flags: <defaults>
</compile_context>

<pallas_src>
import functools
import math

import jax
import jax.numpy as jnp
from jax.experimental import pallas as pl
from jax.experimental.pallas import tpu as pltpu


def _strongermax_kernel(x_ref, o_ref, *, log_strength, dyn_subtract_max,
                        exp_bias, sum_to_1, row_scale):
    # x_ref / o_ref: (block_rows, T) VMEM tiles; reduction over the lane
    # (last) axis, fully contained in the block -> single-pass softmax.
    x = x_ref[...].astype(jnp.float32)

    # strength**x_adj == exp(x_adj * ln(strength)).  All static constants
    # (ln(strength) scaling, -xmax_guess*ln(strength), ln(final_scale) on the
    # non-normalized path) are pre-folded into log_strength / exp_bias.
    if log_strength != 1.0:
        e = x * jnp.float32(log_strength)
    else:
        e = x

    if dyn_subtract_max:
        m = jnp.max(x, axis=-1, keepdims=True)            # XLU reduce, (rows,1)
        if log_strength != 1.0:
            m = m * jnp.float32(log_strength)              # per-row scalar math
        e = e + (jnp.float32(exp_bias) - m)                # one full-block add
    elif exp_bias != 0.0:
        e = e + jnp.float32(exp_bias)                      # one full-block add

    p = jnp.exp(e)                                         # EUP

    if sum_to_1:
        s = jnp.sum(p, axis=-1, keepdims=True)             # XLU reduce, (rows,1)
        # Per-row reciprocal on the EUP slot (not a full-block NR divide);
        # final_scale folded into the same per-row scalar.
        inv = pl.reciprocal(s, approx=False)
        if row_scale != 1.0:
            inv = inv * jnp.float32(row_scale)
        p = p * inv                                        # single full-block mul

    o_ref[...] = p.astype(o_ref.dtype)


def _sublane_multiple(dtype):
    """Sublane packing multiple for the dtype (8 f32 / 16 bf16 / 32 int8-fp8)."""
    itemsize = jnp.dtype(dtype).itemsize
    if itemsize >= 4:
        return 8
    if itemsize == 2:
        return 16
    return 32


def _choose_block_rows(total_rows, row_bytes, mult, target_bytes=2 * 1024 * 1024):
    """Block row-count: VMEM-budgeted (~2 MiB), sublane-aligned, and capped so
    the grid has >=2 (ideally >=4) steps for megacore sharding / overlap."""
    if total_rows <= mult:
        return total_rows                           # full extent -> always legal
    rows = min(total_rows, max(mult, target_bytes // max(row_bytes, 1)))
    rows = max(mult, (rows // mult) * mult)
    if total_rows >= 4 * mult:
        min_steps = 4
    elif total_rows >= 2 * mult:
        min_steps = 2
    else:
        min_steps = 1
    if min_steps > 1:
        cap = -(-total_rows // min_steps)           # ceil(total_rows / min_steps)
        cap = max(mult, (cap // mult) * mult)       # keep sublane alignment
        rows = min(rows, cap)
    return min(rows, total_rows)


def strongermax(x, *, strength=math.e, subtract_max=True, xmax_guess=None,
                sum_to_1=True, divisor=1.0, div_by_seq_len=False):
    """Strongermax over the last axis of x (any leading shape).

    strength / xmax_guess / divisor are static (Python) config values, matching
    the nn.Module attributes set in __init__.
    """
    orig_shape = x.shape
    T = orig_shape[-1]
    total_rows = int(math.prod(orig_shape[:-1])) if len(orig_shape) > 1 else 1
    x2 = x.reshape(total_rows, T)

    final_scale = 1.0 / float(divisor)
    if div_by_seq_len:
        final_scale /= float(T)

    log_strength = float(math.log(float(strength)))

    # Fold every static constant into a single additive exponent bias:
    #   - xmax_guess subtraction:        -guess * ln(strength)
    #   - final_scale on the non-normalized path:  + ln(final_scale)
    # (final_scale > 0 always, it is 1/divisor[/T]).
    exp_bias = 0.0
    dyn_subtract_max = bool(subtract_max) and xmax_guess is None
    if subtract_max and xmax_guess is not None:
        exp_bias -= float(xmax_guess) * log_strength
    if (not sum_to_1) and final_scale != 1.0:
        exp_bias += math.log(final_scale)

    mult = _sublane_multiple(x2.dtype)
    row_bytes = T * x2.dtype.itemsize
    block_rows = _choose_block_rows(total_rows, row_bytes, mult)
    grid = (pl.cdiv(total_rows, block_rows),)

    kernel = functools.partial(
        _strongermax_kernel,
        log_strength=log_strength,
        dyn_subtract_max=dyn_subtract_max,
        exp_bias=float(exp_bias),
        sum_to_1=bool(sum_to_1),
        row_scale=float(final_scale) if sum_to_1 else 1.0,
    )

    out2 = pl.pallas_call(
        kernel,
        out_shape=jax.ShapeDtypeStruct((total_rows, T), x.dtype),
        grid=grid,
        in_specs=[pl.BlockSpec((block_rows, T), lambda i: (i, 0))],
        out_specs=pl.BlockSpec((block_rows, T), lambda i: (i, 0)),
        compiler_params=pltpu.CompilerParams(
            dimension_semantics=("parallel",),
            vmem_limit_bytes=32 * 1024 * 1024,
        ),
    )(x2)

    return out2.reshape(orig_shape)


def _reference(x, *, strength, subtract_max, xmax_guess, sum_to_1, divisor,
               div_by_seq_len):
    """Plain-JAX mirror of the PyTorch forward (default eval path)."""
    if subtract_max:
        if xmax_guess is not None:
            x_adj = x - xmax_guess
        else:
            x_adj = x - jnp.max(x, axis=-1, keepdims=True)
    else:
        x_adj = x
    r = jnp.power(jnp.float32(strength), x_adj)
    if sum_to_1:
        r = r / jnp.sum(r, axis=-1, keepdims=True)
    if div_by_seq_len:
        r = r / x.shape[-1]
    return r / divisor


if __name__ == "__main__":
    key = jax.random.PRNGKey(0)
    k1, k2 = jax.random.split(key)

    # (a) Small attention-score shape (T < 128; correct, lane-sparse path).
    x_small = 4.0 * jax.random.normal(k1, (2, 4, 16, 16), dtype=jnp.float32)
    # (b) Lane-dense attention shape (T multiple of 128; >=4 grid steps).
    x_wide = 4.0 * jax.random.normal(k2, (2, 2, 128, 128), dtype=jnp.float32)

    configs = [
        # "stronger base" softmax: strength=2, subtract max, sum to 1.
        dict(strength=2.0, subtract_max=True, xmax_guess=None,
             sum_to_1=True, divisor=1.0, div_by_seq_len=False),
        # divisor / div_by_seq_len / no-normalization branches (scale folded
        # into the exponent bias inside the kernel).
        dict(strength=math.e, subtract_max=True, xmax_guess=None,
             sum_to_1=False, divisor=2.0, div_by_seq_len=True),
        # xmax_guess path (constant subtraction folded into exponent bias).
        dict(strength=2.0, subtract_max=True, xmax_guess=3.0,
             sum_to_1=True, divisor=4.0, div_by_seq_len=False),
        # no max subtraction at all.
        dict(strength=math.e, subtract_max=False, xmax_guess=None,
             sum_to_1=True, divisor=1.0, div_by_seq_len=False),
    ]

    for cfg in configs:
        for x in (x_small, x_wide):
            out = jax.block_until_ready(strongermax(x, **cfg))
            ref = _reference(x, **cfg)
            assert out.shape == x.shape and out.dtype == x.dtype
            assert jnp.allclose(out, ref, atol=1e-6, rtol=1e-4), cfg

    # bf16 input exercises the 16-row sublane-packing alignment path.
    x_bf16 = x_wide.astype(jnp.bfloat16)
    out_bf = jax.block_until_ready(strongermax(x_bf16, **configs[0]))
    ref_bf = _reference(x_bf16.astype(jnp.float32), **configs[0])
    assert out_bf.dtype == jnp.bfloat16
    assert jnp.allclose(out_bf.astype(jnp.float32), ref_bf, atol=2e-3, rtol=3e-2)

    print("KERNEL_OK")
</pallas_src>

<mosaic_0001>
module attributes {stable_mosaic.version = 11 : i64} {
  func.func @_strongermax_kernel(%arg0: i32, %arg1: memref<32x16xf32, #tpu.memory_space<vmem>>, %arg2: memref<32x16xf32, #tpu.memory_space<vmem>>) attributes {dimension_semantics = [#tpu.dimension_semantics<parallel>], iteration_bounds = array<i64: 4>, scalar_prefetch = 0 : i64, scratch_operands = 0 : i64, tpu.core_type = #tpu.core_type<tc>, window_params = [{transform_indices = @transform_0, window_bounds = array<i64: 32, 16>}, {transform_indices = @transform_1, window_bounds = array<i64: 32, 16>}]} {
    %c0 = arith.constant 0 : index
    %c0_0 = arith.constant 0 : index
    %0 = vector.load %arg1[%c0, %c0_0] : memref<32x16xf32, #tpu.memory_space<vmem>>, vector<32x16xf32>
    %cst = arith.constant 0.693147182 : f32
    %1 = vector.broadcast %cst : f32 to vector<32x16xf32>
    %2 = arith.mulf %0, %1 : vector<32x16xf32>
    %cst_1 = arith.constant dense<0xFF800000> : vector<32xf32>
    %3 = vector.multi_reduction <maximumf>, %0, %cst_1 [1] : vector<32x16xf32> to vector<32xf32>
    %4 = vector.shape_cast %3 : vector<32xf32> to vector<32x1xf32>
    %cst_2 = arith.constant 0.693147182 : f32
    %5 = vector.broadcast %cst_2 : f32 to vector<32x1xf32>
    %6 = arith.mulf %4, %5 : vector<32x1xf32>
    %cst_3 = arith.constant 0.000000e+00 : f32
    %7 = vector.broadcast %cst_3 : f32 to vector<32x1xf32>
    %8 = arith.subf %7, %6 : vector<32x1xf32>
    %9 = vector.broadcast %8 : vector<32x1xf32> to vector<32x16xf32>
    %10 = arith.addf %2, %9 : vector<32x16xf32>
    %11 = math.exp %10 : vector<32x16xf32>
    %cst_4 = arith.constant dense<0.000000e+00> : vector<32xf32>
    %12 = vector.multi_reduction <add>, %11, %cst_4 [1] : vector<32x16xf32> to vector<32xf32>
    %13 = vector.shape_cast %12 : vector<32xf32> to vector<32x1xf32>
    %14 = tpu.reciprocal %13 : vector<32x1xf32> -> vector<32x1xf32>
    %15 = vector.broadcast %14 : vector<32x1xf32> to vector<32x16xf32>
    %16 = arith.mulf %11, %15 : vector<32x16xf32>
    %c0_5 = arith.constant 0 : index
    %c0_6 = arith.constant 0 : index
    %17 = vector.load %arg2[%c0_5, %c0_6] : memref<32x16xf32, #tpu.memory_space<vmem>>, vector<32x16xf32>
    tpu.vector_store %arg2[%c0_5, %c0_6], %16 {strides = array<i32>} : memref<32x16xf32, #tpu.memory_space<vmem>>, vector<32x16xf32>,
    return
  }
  func.func @transform_0(%arg0: i32) -> (i32, i32) {
    %c0_i32 = arith.constant 0 : i32
    %c0_i32_0 = arith.constant 0 : i32
    return %arg0, %c0_i32 : i32, i32
  }
  func.func @transform_1(%arg0: i32) -> (i32, i32) {
    %c0_i32 = arith.constant 0 : i32
    %c0_i32_0 = arith.constant 0 : i32
    return %arg0, %c0_i32 : i32, i32
  }
}

</mosaic_0001>

<llo_original>
// kernel: tpu_custom_call.1
$region0: #{tpu_custom_call.1}
  #allocation0 [shape = 'u32[]', space=smem, size = 0x4, offset = 0x4, fixed_abs, tag = 'smem constant byte address 0x4 - core index']
  #allocation1 [shape = 'u32[144,128]{1,0:T(1,128)}', space=vmem, size = 0x12000, scoped, tag = 'internal scratch']
  %s0 = inlined_call_operand.vmem [shape: f32[128,16], index: 0, kind: input, shape index: {}]
  %s1 = inlined_call_operand.vmem [shape: f32[128,16], index: 1, kind: output, shape index: {}]
  %s2 = sld [smem:[#allocation0]]
  $region37: #{tpu_custom_call.1} parent=0
    _
  %s4 = ssub.s32 1, %s2
  %s5 = scalar_select 0, %s4, %s2
  loop: start=0, step=1, limit=6
  $region2: #{tpu_custom_call.1} parent=0 // loop_pre_header
    _
  $region3: #{tpu_custom_call.1} parent=0 // loop_header
    %s7 = sphi 0, %s11
    %p8 = scmp.ge.s32.totalorder %s7, 6
    %s17 = sphi 0, %s19
    %s20 = sphi 0, %s17
    %s21 = sphi 0, %s20
    %s37 = sphi 0, %s21
    %s43 = sphi 0, %s45
    %s46 = sphi 0, %s43
    %s47 = sphi 0, %s46
    %s63 = sphi 0, %s47
  $region4: #{tpu_custom_call.1} parent=0 // loop_header_branch
    %10 = sbr.rel (%p8) target = $region8
  $region5: #{tpu_custom_call.1} parent=0 // loop_body
    %s12 = ssub.s32 %s7, 1
    %s13 = ssub.s32 %s7, 2
    %s14 = sadd.s32 %s7, 1
    %s15 = ssub.s32 %s7, %s14
    %p16 = scmp.eq.s32.totalorder %s15, 0
    %s18 = sadd.s32 %s17, 1
    %s19 = scalar_select %p16, %s17, %s18
    %p22 = pneg %p16
    %p23 = scmp.eq.s32.totalorder %s7, 3
    %p24 = por %p22, %p23
    %p25 = scmp.ne.s32.totalorder %s17, %s20
    %p26 = scmp.eq.s32.totalorder %s7, 0
    %p27 = por %p25, %p26
    %p28 = scmp.ne.s32.totalorder %s17, %s20
    %p29 = scmp.eq.s32.totalorder %s12, 3
    %p30 = por %p28, %p29
    %p31 = scmp.ne.s32.totalorder %s20, %s21
    %p32 = scmp.eq.s32.totalorder %s12, 0
    %p33 = por %p31, %p32
    %p34 = scmp.ne.s32.totalorder %s20, %s21
    %p35 = scmp.eq.s32.totalorder %s13, 3
    %p36 = por %p34, %p35
    %p38 = scmp.ne.s32.totalorder %s21, %s37
    %p39 = scmp.eq.s32.totalorder %s13, 0
    %p40 = por %p38, %p39
    %s41 = ssub.s32 %s7, %s14
    %p42 = scmp.eq.s32.totalorder %s41, 0
    %s44 = sadd.s32 %s43, 1
    %s45 = scalar_select %p42, %s43, %s44
    %p48 = pneg %p42
    %p49 = scmp.eq.s32.totalorder %s7, 3
    %p50 = por %p48, %p49
    %p51 = scmp.ne.s32.totalorder %s43, %s46
    %p52 = scmp.eq.s32.totalorder %s7, 0
    %p53 = por %p51, %p52
    %p54 = scmp.ne.s32.totalorder %s43, %s46
    %p55 = scmp.eq.s32.totalorder %s12, 3
    %p56 = por %p54, %p55
    %p57 = scmp.ne.s32.totalorder %s46, %s47
    %p58 = scmp.eq.s32.totalorder %s12, 0
    %p59 = por %p57, %p58
    %p60 = scmp.ne.s32.totalorder %s46, %s47
    %p61 = scmp.eq.s32.totalorder %s13, 3
    %p62 = por %p60, %p61
    %p64 = scmp.ne.s32.totalorder %s47, %s63
    %p65 = scmp.eq.s32.totalorder %s13, 0
    %p66 = por %p64, %p65
    %p67 = scmp.le.s32.totalorder 1, %s7
    %p68 = scmp.lt.s32.totalorder %s7, 5
    %p69 = pnand %p67, %p68
    %p70 = pneg %p69
    // Predicated region
    $region9: #{tpu_custom_call.1} parent=5 // pred_check
      _
    $region10: #{tpu_custom_call.1} parent=5 // pred_check_branch
      %72 = sbr.rel (%p69) target = $region12
    $region11: #{tpu_custom_call.1} parent=5 // pred_region
      %s73 = ssub.s32 %s7, 1
    $region12: #{tpu_custom_call.1} parent=5 // pred_fallthru
      _
    %p74 = scmp.lt.s32.totalorder %s7, 4
    // Predicated region
    $region13: #{tpu_custom_call.1} parent=5 // pred_check
      %p75 = pneg %p74
    $region14: #{tpu_custom_call.1} parent=5 // pred_check_branch
      %77 = sbr.rel (%p75) target = $region16
    $region15: #{tpu_custom_call.1} parent=5 // pred_region
      // Predicated region
      $region17: #{tpu_custom_call.1} parent=15 // pred_check
        %p78 = pneg %p27
      $region18: #{tpu_custom_call.1} parent=15 // pred_check_branch
        %80 = sbr.rel (%p78) target = $region20
      $region19: #{tpu_custom_call.1} parent=15 // pred_region
        %s81 = smul.u32 4, %s7
        %p82 = scmp.lt.s32.totalorder %s81, 15
        %s83 = scalar_select %p82, %s81, 15
        %s84 = smul.addr %s83, 8
        %s85 = scalar_lea.vmem %s0, %s84
        %s86 = smul.u32 4, %s7
      $region20: #{tpu_custom_call.1} parent=15 // pred_fallthru
        _
    $region16: #{tpu_custom_call.1} parent=5 // pred_fallthru
      _
    %p87 = scmp.le.s32.totalorder 1, %s7
    %p88 = scmp.lt.s32.totalorder %s7, 5
    %p89 = pnand %p87, %p88
    %p90 = pneg %p89
    // Predicated region
    $region21: #{tpu_custom_call.1} parent=5 // pred_check
      _
    $region22: #{tpu_custom_call.1} parent=5 // pred_check_branch
      %92 = sbr.rel (%p89) target = $region24
    $region23: #{tpu_custom_call.1} parent=5 // pred_region
      %s93 = ssub.s32 %s7, 1
      %s94 = smul.u32 4, %s12
      %p95 = scmp.lt.s32.totalorder %s94, 15
      %s96 = scalar_select %p95, %s94, 15
      %s97 = smul.addr %s96, 8
      %s98 = scalar_lea.vmem %s0, %s97
      %p99 = pneg %p33
      %p100 = pneg %p30
      %p101 = pneg %p59
      %p102 = pneg %p56
      %s103 = smul.u32 4, %s12
      %p104 = scmp.lt.s32.totalorder %s103, 15
      %s105 = scalar_select %p104, %s103, 15
      %s106 = smul.addr %s105, 8
      %s107 = scalar_lea.vmem %s1, %s106
      %s108 = smul.u32 4, %s12
      %p109 = scmp.lt.s32.totalorder %s108, 15
      %s110 = scalar_select %p109, %s108, 15
      %s111 = smul.addr %s110, 8
      %s112 = scalar_lea.vmem %s0, %s111
      %s113 = smul.u32 4, %s12
      %s114 = smul.u32 4, %s12
      %p115 = scmp.lt.s32.totalorder %s114, 15
      %s116 = scalar_select %p115, %s114, 15
      %s117 = smul.addr %s116, 8
      %s118 = scalar_lea.vmem %s1, %s117
      %s119 = smul.u32 4, %s12
      %v120 = vld [vmem:[%s112] sm:$0xff]
      %v121 = vld [vmem:[%s112 + $0x8] sm:$0xff]
      %v122 = vld [vmem:[%s112 + $0x10] sm:$0xff]
      %v123 = vld [vmem:[%s112 + $0x18] sm:$0xff]
      %v124 = vmul.f32 %v120, 0.6931472
      %v125 = vmul.f32 %v121, 0.6931472
      %v126 = vmul.f32 %v122, 0.6931472
      %v127 = vmul.f32 %v123, 0.6931472
      %vm128 = vcmask 130048
      %v129 = vsel %vm128, %v120, -inf
      %130 = vmax.xlane.f32.xlu0 %v129
      %v131 = vpop.xlane.xlu0 %130
      %v132 = vsel %vm128, %v121, -inf
      %133 = vmax.xlane.f32.xlu0 %v132
      %v134 = vpop.xlane.xlu0 %133
      %v135 = vsel %vm128, %v122, -inf
      %136 = vmax.xlane.f32.xlu0 %v135
      %v137 = vpop.xlane.xlu0 %136
      %v138 = vsel %vm128, %v123, -inf
      %139 = vmax.xlane.f32.xlu0 %v138
      %v140 = vpop.xlane.xlu0 %139
      %v141 = vmul.f32 %v131, 0.6931472
      %v142 = vmul.f32 %v134, 0.6931472
      %v143 = vmul.f32 %v137, 0.6931472
      %v144 = vmul.f32 %v140, 0.6931472
      %v145 = vsub.f32 0.0, %v141
      %v146 = vsub.f32 0.0, %v142
      %v147 = vsub.f32 0.0, %v143
      %v148 = vsub.f32 0.0, %v144
      %v149 = vadd.f32 %v124, %v145
      %v150 = vadd.f32 %v125, %v146
      %v151 = vadd.f32 %v126, %v147
      %v152 = vadd.f32 %v127, %v148
      %v153 = vmul.f32 %v149, 1.442695
      %v154 = vpow.pop %v153
      %v155 = vmul.f32 %v150, 1.442695
      %v156 = vpow.pop %v155
      %v157 = vmul.f32 %v151, 1.442695
      %v158 = vpow.pop %v157
      %v159 = vmul.f32 %v152, 1.442695
      %v160 = vpow.pop %v159
      %v161 = vsel %vm128, %v154, 0.0
      %162 = vadd.xlane.f32.xlu0 %v161
      %v163 = vpop.xlane.xlu0 %162
      %v164 = vsel %vm128, %v156, 0.0
      %165 = vadd.xlane.f32.xlu0 %v164
      %v166 = vpop.xlane.xlu0 %165
      %v167 = vsel %vm128, %v158, 0.0
      %168 = vadd.xlane.f32.xlu0 %v167
      %v169 = vpop.xlane.xlu0 %168
      %v170 = vsel %vm128, %v160, 0.0
      %171 = vadd.xlane.f32.xlu0 %v170
      %v172 = vpop.xlane.xlu0 %171
      %v173 = vrcp.pop %v163
      %v174 = vrcp.pop %v166
      %v175 = vrcp.pop %v169
      %v176 = vrcp.pop %v172
      %v177 = vmul.f32 %v154, %v173
      %v178 = vmul.f32 %v156, %v174
      %v179 = vmul.f32 %v158, %v175
      %v180 = vmul.f32 %v160, %v176
      %181 = vst.msk [vmem:[%s118] sm:$0xff] %vm128, %v177
      %182 = vst.msk [vmem:[%s118 + $0x8] sm:$0xff] %vm128, %v178
      %183 = vst.msk [vmem:[%s118 + $0x10] sm:$0xff] %vm128, %v179
      %184 = vst.msk [vmem:[%s118 + $0x18] sm:$0xff] %vm128, %v180
      %s185 = smul.u32 4, %s12
      %p186 = scmp.lt.s32.totalorder %s185, 15
      %s187 = scalar_select %p186, %s185, 15
      %s188 = smul.addr %s187, 8
      %s189 = scalar_lea.vmem %s1, %s188
      // Predicated region
      $region25: #{tpu_custom_call.1} parent=23 // pred_check
        %p190 = pneg %p56
      $region26: #{tpu_custom_call.1} parent=23 // pred_check_branch
        %192 = sbr.rel (%p190) target = $region28
      $region27: #{tpu_custom_call.1} parent=23 // pred_region
        %s193 = smul.u32 4, %s12
      $region28: #{tpu_custom_call.1} parent=23 // pred_fallthru
        _
    $region24: #{tpu_custom_call.1} parent=5 // pred_fallthru
      _
    %p194 = scmp.le.s32.totalorder 2, %s7
    // Predicated region
    $region29: #{tpu_custom_call.1} parent=5 // pred_check
      %p195 = pneg %p194
    $region30: #{tpu_custom_call.1} parent=5 // pred_check_branch
      %197 = sbr.rel (%p195) target = $region32
    $region31: #{tpu_custom_call.1} parent=5 // pred_region
      %s198 = ssub.s32 %s7, 2
      // Predicated region
      $region33: #{tpu_custom_call.1} parent=31 // pred_check
        %p199 = pneg %p62
      $region34: #{tpu_custom_call.1} parent=31 // pred_check_branch
        %201 = sbr.rel (%p199) target = $region36
      $region35: #{tpu_custom_call.1} parent=31 // pred_region
        %s202 = smul.u32 4, %s13
        %p203 = scmp.lt.s32.totalorder %s202, 15
        %s204 = scalar_select %p203, %s202, 15
        %s205 = smul.addr %s204, 8
        %s206 = scalar_lea.vmem %s1, %s205
      $region36: #{tpu_custom_call.1} parent=31 // pred_fallthru
        _
    $region32: #{tpu_custom_call.1} parent=5 // pred_fallthru
      _
  $region6: #{tpu_custom_call.1} parent=0 // loop_footer
    %s11 = sadd.s32 1, %s7
  $region7: #{tpu_custom_call.1} parent=0 // loop_footer_branch
    %6 = sbr.rel target = $region3
  $region8: #{tpu_custom_call.1} parent=0 // loop_exit
    _

</llo_original>
